<compile_context>
chip_gen: v7x
topology: tpu7x:2x2x1
jax: 0.10.0
libtpu: 0.0.40
codegen_flags: <defaults>
</compile_context>

<pallas_src>
import functools

import jax
import jax.numpy as jnp
from jax.experimental import pallas as pl
from jax.experimental.pallas import tpu as pltpu

NEG_SLOPE = 0.01              # nn.LeakyReLU() default
LANE = 128                    # TPU lane width; channels padded to a multiple
MATMUL_DTYPE = jnp.float32    # set to jnp.bfloat16 on v6e/v7x (loosen test tol)
ACT_DTYPE = MATMUL_DTYPE      # activations stored in matmul dtype (cast once)


def _round_up(x, m):
    return (x + m - 1) // m * m


def _leaky(x):
    return jnp.where(x > 0, x, NEG_SLOPE * x)


# ---------------------------------------------------------------------------
# Roll-direction probe (defensive): pin down pltpu.roll's sign once at startup
# so the kw taps can never be silently mirrored.
# ---------------------------------------------------------------------------
_ROLL_SIGN = None


def _roll_probe_kernel(x_ref, o_ref):
    o_ref[...] = pltpu.roll(x_ref[...], 1, axis=0)


def _roll_sign():
    global _ROLL_SIGN
    if _ROLL_SIGN is None:
        x = jnp.arange(16 * 128, dtype=jnp.float32).reshape(16, 128)
        y = pl.pallas_call(
            _roll_probe_kernel,
            out_shape=jax.ShapeDtypeStruct((16, 128), jnp.float32))(x)
        if bool(jnp.all(y == jnp.roll(x, 1, axis=0))):
            _ROLL_SIGN = 1          # pltpu.roll(x, s) == jnp.roll(x, s)
        elif bool(jnp.all(y == jnp.roll(x, -1, axis=0))):
            _ROLL_SIGN = -1         # opposite convention
        else:
            raise RuntimeError("unexpected pltpu.roll semantics")
    return _ROLL_SIGN


# ---------------------------------------------------------------------------
# Fused DBlock kernel (one batch image per grid step)
# ---------------------------------------------------------------------------
def _dblock_kernel(x_ref, mask_ref, w_rb_ref, b_rb_ref, w_dn_ref, b_dn_ref,
                   o_ref, act_a, act_b, stk_rb, stk_dn,
                   *, H, Wpad, C, Co, roll_sign):
    """Whole DBlock for one image, flat padded layout.

    x_ref   : [1, (H+2)*Wpad, C]   spatially padded + channel padded input
    mask_ref: [H*Wpad, 1]          1.0 on real columns (1..W), 0.0 on border/pad
    w_rb_ref: [12, 3C, C]          (conv*3 + kw) ResBlock tap columns, dh-major K
    b_rb_ref: [4, 1, C]
    w_dn_ref: [4, 4C, Co]          (kw) downsample tap columns, kh-major K
    b_dn_ref: [1, Co]
    o_ref   : [1, Ho*Wpad, Co]     downsample output, full padded width
    act_a/b : VMEM [(H+2)*Wpad, C] inter-stage activations (never leave chip)
    stk_rb  : VMEM [H*Wpad, 3C]    K-fused 3x3 operand
    stk_dn  : VMEM [Ho*Wpad, 4C]   K-fused 4x4 operand
    """
    Ho = H // 2
    NR = H * Wpad            # interior rows, flattened over full padded width
    NRd = Ho * Wpad
    mask = mask_ref[...]     # [NR, 1] f32

    def conv3x3(read, conv_idx, resid):
        # Stack the 3 dh-shifted windows along K (aligned row slices -> no relayout).
        for dh in range(3):
            stk_rb[:, dh * C:(dh + 1) * C] = read(dh * Wpad, dh * Wpad + NR)
        stk = stk_rb[...]
        acc = jnp.zeros((NR, C), jnp.float32)
        for kwi in range(3):                       # kw column of the 3x3 kernel
            part = jnp.dot(stk, w_rb_ref[conv_idx * 3 + kwi],
                           preferred_element_type=jnp.float32)
            # align input column j+dw onto output column j (dw = kwi - 1);
            # wrap-around only hits masked border columns.
            shift = ((1 - kwi) * roll_sign) % NR
            if shift:
                part = pltpu.roll(part, shift, axis=0)
            acc = acc + part
        y = acc + b_rb_ref[conv_idx]
        if resid is not None:
            y = y + resid.astype(jnp.float32)
        return _leaky(y) * mask                    # zero border/pad columns

    def store_act(dst, y):
        # zero only the 1-row top/bottom border strips; columns handled by mask
        dst[0:Wpad, :] = jnp.zeros((Wpad, C), dst.dtype)
        dst[Wpad:Wpad + NR, :] = y.astype(dst.dtype)
        dst[Wpad + NR:2 * Wpad + NR, :] = jnp.zeros((Wpad, C), dst.dtype)

    x_read = lambda lo, hi: x_ref[0, lo:hi, :]
    a_read = lambda lo, hi: act_a[lo:hi, :]
    b_read = lambda lo, hi: act_b[lo:hi, :]

    # ---- ResBlock 1 -------------------------------------------------------
    y1 = conv3x3(x_read, 0, None)
    store_act(act_a, y1)
    a1 = conv3x3(a_read, 1, x_ref[0, Wpad:Wpad + NR, :])   # residual: aligned slice
    store_act(act_b, a1)

    # ---- ResBlock 2 -------------------------------------------------------
    y2 = conv3x3(b_read, 2, None)
    store_act(act_a, y2)
    a2 = conv3x3(a_read, 3, act_b[Wpad:Wpad + NR, :])
    store_act(act_a, a2)                                   # y2 already consumed

    # ---- 4x4 / stride-2 downsample + LeakyReLU ----------------------------
    # Stride-2 rows handled by aligned block copies into the K-fused operand;
    # stride-2 columns handled by computing full padded width and letting the
    # wrapper drop odd columns of the (4x smaller) output.
    for u in range(Ho):
        for kh in range(4):
            src = (2 * u + kh) * Wpad
            stk_dn[u * Wpad:(u + 1) * Wpad, kh * C:(kh + 1) * C] = \
                act_a[src:src + Wpad, :]
    stkd = stk_dn[...]
    accd = jnp.zeros((NRd, Co), jnp.float32)
    for kw in range(4):
        part = jnp.dot(stkd, w_dn_ref[kw], preferred_element_type=jnp.float32)
        shift = ((-kw) * roll_sign) % NRd
        if shift:
            part = pltpu.roll(part, shift, axis=0)
        accd = accd + part
    o_ref[0] = _leaky(accd + b_dn_ref[...]).astype(o_ref.dtype)


# ---------------------------------------------------------------------------
# pallas_call wrapper
# ---------------------------------------------------------------------------
def _dblock_call(x_flat, col_mask, w_rb, b_rb, w_dn, b_dn,
                 *, H, Wpad, C, Co, roll_sign):
    B = x_flat.shape[0]
    HpW = (H + 2) * Wpad
    NR = H * Wpad
    NRd = (H // 2) * Wpad
    kernel = functools.partial(_dblock_kernel, H=H, Wpad=Wpad, C=C, Co=Co,
                               roll_sign=roll_sign)
    return pl.pallas_call(
        kernel,
        out_shape=jax.ShapeDtypeStruct((B, NRd, Co), jnp.float32),
        grid=(B,),
        in_specs=[
            pl.BlockSpec((1, HpW, C), lambda b: (b, 0, 0)),
            pl.BlockSpec((NR, 1), lambda b: (0, 0)),
            pl.BlockSpec((12, 3 * C, C), lambda b: (0, 0, 0)),
            pl.BlockSpec((4, 1, C), lambda b: (0, 0, 0)),
            pl.BlockSpec((4, 4 * C, Co), lambda b: (0, 0, 0)),
            pl.BlockSpec((1, Co), lambda b: (0, 0)),
        ],
        out_specs=pl.BlockSpec((1, NRd, Co), lambda b: (b, 0, 0)),
        scratch_shapes=[
            pltpu.VMEM((HpW, C), ACT_DTYPE),          # activation ping
            pltpu.VMEM((HpW, C), ACT_DTYPE),          # activation pong
            pltpu.VMEM((NR, 3 * C), MATMUL_DTYPE),    # K-fused 3x3 operand
            pltpu.VMEM((NRd, 4 * C), MATMUL_DTYPE),   # K-fused 4x4 operand
        ],
        # ~9 MB VMEM at these shapes -> well under every generation's default
        # scoped limit, so vmem_limit_bytes is left alone.
        compiler_params=pltpu.CompilerParams(dimension_semantics=("parallel",)),
    )(x_flat, col_mask, w_rb, b_rb, w_dn, b_dn)


# ---------------------------------------------------------------------------
# Parameter preparation (hoisted out of the per-forward path)
# ---------------------------------------------------------------------------
def _prep_conv3(w, b, C):
    """[Cout, Cin, 3, 3] -> [3(kw), 3C(kh-major, Cin), C] + [1, C]."""
    cout, cin, _, _ = w.shape
    wt = jnp.transpose(w, (3, 2, 1, 0))                      # [kw, kh, Cin, Cout]
    wt = jnp.pad(wt, ((0, 0), (0, 0), (0, C - cin), (0, C - cout)))
    wt = wt.reshape(3, 3 * C, C).astype(MATMUL_DTYPE)
    bm = jnp.pad(b, (0, C - cout)).reshape(1, C).astype(jnp.float32)
    return wt, bm


def _prep_conv4(w, b, C, Co):
    """[Cout, Cin, 4, 4] -> [4(kw), 4C(kh-major, Cin), Co] + [1, Co]."""
    cout, cin, _, _ = w.shape
    wt = jnp.transpose(w, (3, 2, 1, 0))                      # [kw, kh, Cin, Cout]
    wt = jnp.pad(wt, ((0, 0), (0, 0), (0, C - cin), (0, Co - cout)))
    wt = wt.reshape(4, 4 * C, Co).astype(MATMUL_DTYPE)
    bm = jnp.pad(b, (0, Co - cout)).reshape(1, Co).astype(jnp.float32)
    return wt, bm


def prepare_params(params, n):
    C = _round_up(n, LANE)
    Co = _round_up(2 * n, LANE)
    w_cols, b_rows = [], []
    for blk in ("block1", "block2"):
        for wk, bk in (("w1", "b1"), ("w2", "b2")):
            wc, bc = _prep_conv3(params[blk][wk], params[blk][bk], C)
            w_cols.append(wc)
            b_rows.append(bc)
    w_rb = jnp.concatenate(w_cols, axis=0)                   # [12, 3C, C]
    b_rb = jnp.stack(b_rows, axis=0)                         # [4, 1, C]
    w_dn, b_dn = _prep_conv4(params["wd"], params["bd"], C, Co)
    return {"w_rb": w_rb, "b_rb": b_rb, "w_dn": w_dn, "b_dn": b_dn}


# ---------------------------------------------------------------------------
# Forward pass
# ---------------------------------------------------------------------------
@functools.partial(jax.jit, static_argnames=("n", "roll_sign"))
def _dblock_forward_jit(x_nchw, prep, n, roll_sign):
    B, Cin, H, W = x_nchw.shape
    assert H % 2 == 0 and W % 2 == 0
    C = _round_up(n, LANE)
    Co = _round_up(2 * n, LANE)
    Wpad = _round_up(W + 2, 8)                               # sublane-friendly width
    Ho = H // 2

    # NCHW -> NHWC, 1px zero border + width/channel pad, flatten rows
    x = jnp.transpose(x_nchw, (0, 2, 3, 1))
    x = jnp.pad(x, ((0, 0), (1, 1), (1, Wpad - W - 1), (0, C - Cin)))
    x = x.reshape(B, (H + 2) * Wpad, C).astype(ACT_DTYPE)

    # interior-column mask (constant, folded by XLA)
    j = jnp.arange(Wpad, dtype=jnp.int32)
    col_mask = ((j >= 1) & (j <= W)).astype(jnp.float32)
    col_mask = jnp.tile(col_mask, H).reshape(H * Wpad, 1)

    out = _dblock_call(x, col_mask, prep["w_rb"], prep["b_rb"],
                       prep["w_dn"], prep["b_dn"],
                       H=H, Wpad=Wpad, C=C, Co=Co, roll_sign=roll_sign)

    # drop odd columns / padded channels of the (small) output, back to NCHW
    y = out.reshape(B, Ho, Wpad, Co)[:, :, 0:W:2, :2 * n]
    return jnp.transpose(y, (0, 3, 1, 2))


def dblock_forward(x_nchw, prep, n):
    return _dblock_forward_jit(x_nchw, prep, n=n, roll_sign=_roll_sign())


# ---------------------------------------------------------------------------
# Parameter init (PyTorch Conv2d default init layout) + pure-JAX reference
# ---------------------------------------------------------------------------
def init_params(key, n):
    ks = jax.random.split(key, 10)

    def conv_init(kw, kb, cout, cin, ksz):
        fan_in = cin * ksz * ksz
        bound = 1.0 / (fan_in ** 0.5)
        w = jax.random.uniform(kw, (cout, cin, ksz, ksz), jnp.float32, -bound, bound)
        b = jax.random.uniform(kb, (cout,), jnp.float32, -bound, bound)
        return w, b

    b1w1, b1b1 = conv_init(ks[0], ks[1], n, n, 3)
    b1w2, b1b2 = conv_init(ks[2], ks[3], n, n, 3)
    b2w1, b2b1 = conv_init(ks[4], ks[5], n, n, 3)
    b2w2, b2b2 = conv_init(ks[6], ks[7], n, n, 3)
    wd, bd = conv_init(ks[8], ks[9], 2 * n, n, 4)
    return {
        "block1": {"w1": b1w1, "b1": b1b1, "w2": b1w2, "b2": b1b2},
        "block2": {"w1": b2w1, "b1": b2b1, "w2": b2w2, "b2": b2b2},
        "wd": wd, "bd": bd,
    }


def _ref_conv(x_nchw, w, b, stride, pad):
    y = jax.lax.conv_general_dilated(
        x_nchw, w, window_strides=(stride, stride),
        padding=((pad, pad), (pad, pad)),
        dimension_numbers=("NCHW", "OIHW", "NCHW"))
    return y + b.reshape(1, -1, 1, 1)


def dblock_reference(x_nchw, params):
    def rb(x, p):
        y = _leaky(_ref_conv(x, p["w1"], p["b1"], 1, 1))
        return _leaky(_ref_conv(y, p["w2"], p["b2"], 1, 1) + x)
    x = rb(x_nchw, params["block1"])
    x = rb(x, params["block2"])
    return _leaky(_ref_conv(x, params["wd"], params["bd"], 2, 1))


if __name__ == "__main__":
    key = jax.random.PRNGKey(0)
    kx, kp = jax.random.split(key)

    n = 4                     # DBlock(n=4), small synthetic test
    B, H, W = 2, 16, 16
    x = jax.random.normal(kx, (B, n, H, W), dtype=jnp.float32)       # NCHW input
    params = init_params(kp, n)
    prep = prepare_params(params, n)                                 # hoisted once

    out = jax.block_until_ready(dblock_forward(x, prep, n=n))
    assert out.shape == (B, 2 * n, H // 2, W // 2), out.shape

    ref = jax.block_until_ready(dblock_reference(x, params))
    assert jnp.allclose(out, ref, atol=2e-4, rtol=2e-4), (
        float(jnp.max(jnp.abs(out - ref))))

    print("KERNEL_OK")
</pallas_src>

<mosaic_0001>
module attributes {stable_mosaic.version = 11 : i64} {
  func.func @_roll_probe_kernel(%arg0: memref<16x128xf32, #tpu.memory_space<vmem>>, %arg1: memref<16x128xf32, #tpu.memory_space<vmem>>) attributes {dimension_semantics = [], scalar_prefetch = 0 : i64, scratch_operands = 0 : i64, tpu.core_type = #tpu.core_type<tc>} {
    %c0 = arith.constant 0 : index
    %c0_0 = arith.constant 0 : index
    %0 = vector.load %arg0[%c0, %c0_0] : memref<16x128xf32, #tpu.memory_space<vmem>>, vector<16x128xf32>
    %c1_i32 = arith.constant 1 : i32
    %1 = tpu.dynamic_rotate %0 by %c1_i32 dim 0 : vector<16x128xf32>, i32 -> vector<16x128xf32>
    %c0_1 = arith.constant 0 : index
    %c0_2 = arith.constant 0 : index
    %2 = vector.load %arg1[%c0_1, %c0_2] : memref<16x128xf32, #tpu.memory_space<vmem>>, vector<16x128xf32>
    tpu.vector_store %arg1[%c0_1, %c0_2], %1 {strides = array<i32>} : memref<16x128xf32, #tpu.memory_space<vmem>>, vector<16x128xf32>,
    return
  }
}

</mosaic_0001>

<llo_original>
// kernel: tpu_custom_call.1
$region0: #{tpu_custom_call.1}
  #allocation0 [shape = 'u32[]', space=smem, size = 0x4, offset = 0x4, fixed_abs, tag = 'smem constant byte address 0x4 - core index']
  #allocation1 [shape = 'u32[144,128]{1,0:T(1,128)}', space=vmem, size = 0x12000, scoped, tag = 'internal scratch']
  %s0 = inlined_call_operand.hbm [shape: f32[16,128], index: 0, kind: input, shape index: {}]
  %s1 = inlined_call_operand.hbm [shape: f32[16,128], index: 1, kind: output, shape index: {}]
  %s2 = sld [smem:[#allocation0]]
  $region18: #{tpu_custom_call.1} parent=0
    _
  %s4 = ssub.s32 1, %s2
  %s5 = scalar_select 0, %s4, %s2
  $region1: #{tpu_custom_call.1} parent=0
    #allocation2 [shape = 'u8[8192]{0}', space=vmem, size = 0x2000, scoped, tag = 'input window, operand 0, single buffered']
    #allocation3 [shape = 's32[1]{0}', space=sflag, size = 0x4, scoped, tag = 'scoped memory for tpu_custom_call.1']
    #allocation4 [shape = 's32[1]{0}', space=sflag, size = 0x4, scoped, tag = 'scoped memory for tpu_custom_call.1']
    #allocation5 [shape = 'u8[8192]{0}', space=vmem, size = 0x2000, scoped, tag = 'output window, operand 0, single buffered']
    %6 = vsyncpa [#allocation3], 0
    %7 = vsyncpa [#allocation4], 0
    // Predicated region
    $region2: #{tpu_custom_call.1} parent=1 // pred_check
      _
    $region3: #{tpu_custom_call.1} parent=1 // pred_check_branch
      %9 = sbr.rel (0) target = $region5
    $region4: #{tpu_custom_call.1} parent=1 // pred_region
      %s11 = ssub.s32 256, 256
      %12 = vsyncadd [#allocation3], %s11
      %s13 = sshll.u32 [#allocation2], 4
      %s14 = int_to_ptr.vmem [resolvable:$true] %s13
      %19 = dma.hbm_to_vmem [thread:$0]  %s0, 256, %s14, [#allocation3], 128, 128, 8
    $region5: #{tpu_custom_call.1} parent=1 // pred_fallthru
      _
    // Predicated region
    $region6: #{tpu_custom_call.1} parent=1 // pred_check
      _
    $region7: #{tpu_custom_call.1} parent=1 // pred_check_branch
      %21 = sbr.rel (0) target = $region9
    $region8: #{tpu_custom_call.1} parent=1 // pred_region
      %22 = dma.done [#allocation3], 256
    $region9: #{tpu_custom_call.1} parent=1 // pred_fallthru
      _
    %v23 = vld [vmem:[#allocation2] sm:$0xff]
    %v24 = vld [vmem:[#allocation2 + $0x8] sm:$0xff]
    %v25 = vrot.slane %v23, 7
    %v26 = vrot.slane %v24, 7
    %v27 = vlaneseq
    %v28 = vshrl.u32 %v27, 7
    %vm29 = vcmp.lt.s32.totalorder %v28, 1
    %v30 = vsel %vm29, %v25, %v26
    %v31 = vsel %vm29, %v26, %v25
    %32 = vst [vmem:[#allocation5] sm:$0xff] %v31
    %33 = vst [vmem:[#allocation5 + $0x8] sm:$0xff] %v30
    // Predicated region
    $region10: #{tpu_custom_call.1} parent=1 // pred_check
      _
    $region11: #{tpu_custom_call.1} parent=1 // pred_check_branch
      %35 = sbr.rel (0) target = $region13
    $region12: #{tpu_custom_call.1} parent=1 // pred_region
      %s37 = ssub.s32 256, 256
      %38 = vsyncadd [#allocation4], %s37
      %s39 = sshll.u32 [#allocation5], 4
      %s40 = int_to_ptr.vmem [resolvable:$true] %s39
      %45 = dma.vmem_to_hbm [thread:$0]  %s40, 256, %s1, [#allocation4], 128, 128, 8
    $region13: #{tpu_custom_call.1} parent=1 // pred_fallthru
      _
    // Predicated region
    $region14: #{tpu_custom_call.1} parent=1 // pred_check
      _
    $region15: #{tpu_custom_call.1} parent=1 // pred_check_branch
      %47 = sbr.rel (0) target = $region17
    $region16: #{tpu_custom_call.1} parent=1 // pred_region
      %48 = dma.done [#allocation4], 256
    $region17: #{tpu_custom_call.1} parent=1 // pred_fallthru
      _
    %49 = vsyncpa [#allocation3], 1
    %50 = vsyncpa [#allocation4], 1

</llo_original>
